<compile_context>
chip_gen: v7x
topology: tpu7x:2x2x1
jax: 0.10.0
libtpu: 0.0.40
codegen_flags: <defaults>
</compile_context>

<pallas_src>
import functools

import jax
import jax.numpy as jnp
from jax.experimental import pallas as pl
from jax.experimental.pallas import tpu as pltpu


def _round_up(n, m):
    return ((n + m - 1) // m) * m


# ----------------------------------------------------------------------------
# Pallas kernels
# ----------------------------------------------------------------------------
def _conv_kernel(g_ref, xc_ref, wc_ref, xt_ref, wr_ref, b_ref, o_ref, acc_ref,
                 *, apply_relu):
    """Fully fused GraFrankConv layer.

    out = G @ (Xcat @ Wcat) + x_tgt @ Wr + b   (+ optional fused ReLU)

    Grid = (dst row blocks ["parallel"], contraction blocks ["arbitrary"]).
    """
    k = pl.program_id(1)

    @pl.when(k == 0)
    def _init():
        acc_ref[...] = (
            jnp.dot(xt_ref[...], wr_ref[...], preferred_element_type=jnp.float32)
            + b_ref[...])

    # Per-tile neighbor/edge projection on the MXU (f32), then bf16-streamed
    # contraction against G (f32 accumulation in VMEM scratch).
    z = jnp.dot(xc_ref[...], wc_ref[...], preferred_element_type=jnp.float32)
    acc_ref[...] += jnp.dot(g_ref[...], z.astype(g_ref.dtype),
                            preferred_element_type=jnp.float32)

    @pl.when(k == pl.num_programs(1) - 1)
    def _finalize():
        r = acc_ref[...]
        if apply_relu:                      # fused ReLU (static specialization)
            r = jnp.maximum(r, 0.0)
        o_ref[...] = r.astype(o_ref.dtype)


def grafrank_conv(A, x_src, M, e_attr, x_tgt, Wx, We, Wr, b, *,
                  apply_relu=False, stream_dtype=jnp.bfloat16,
                  tb_max=256, tk_max=2048):
    """One GraFrankConv layer as a single fused, contraction-tiled pallas_call."""
    n_dst = A.shape[0]
    n_src, d_in = x_src.shape
    E, d_e = e_attr.shape
    H = Wx.shape[1]
    Dc = d_in + d_e

    # Glue: block-structured feature matrix + stacked weights so that
    #   Xcat @ Wcat == [x_src @ Wx ; e_attr @ We]   (single RHS for G = [A | M]).
    Xcat = jnp.concatenate([
        jnp.concatenate([x_src, jnp.zeros((n_src, d_e), x_src.dtype)], axis=1),
        jnp.concatenate([jnp.zeros((E, d_in), e_attr.dtype), e_attr], axis=1),
    ], axis=0)                                            # [Kc, Dc]
    Wcat = jnp.concatenate([Wx, We], axis=0)              # [Dc, H]
    G = jnp.concatenate([A, M], axis=1)                   # [n_dst, Kc]

    Kc = Xcat.shape[0]
    tb = min(tb_max, _round_up(n_dst, 8))                 # dst-row tile (mult of 8)
    Bp = _round_up(n_dst, tb)
    tk = min(tk_max, _round_up(Kc, 128))                  # contraction tile (mult of 128)
    Kp = _round_up(Kc, tk)

    # bf16 streaming of the big operand; zero padding is benign for the matmul.
    Gp = jnp.pad(G.astype(stream_dtype), ((0, Bp - n_dst), (0, Kp - Kc)))
    Xp = jnp.pad(Xcat, ((0, Kp - Kc), (0, 0)))
    xtp = jnp.pad(x_tgt, ((0, Bp - n_dst), (0, 0)))

    out = pl.pallas_call(
        functools.partial(_conv_kernel, apply_relu=apply_relu),
        out_shape=jax.ShapeDtypeStruct((Bp, H), jnp.float32),
        grid=(Bp // tb, Kp // tk),
        in_specs=[
            pl.BlockSpec((tb, tk), lambda i, k: (i, k)),      # G = [A | M]  (bf16)
            pl.BlockSpec((tk, Dc), lambda i, k: (k, 0)),      # Xcat
            pl.BlockSpec((Dc, H), lambda i, k: (0, 0)),       # Wcat = [Wx ; We]
            pl.BlockSpec((tb, d_in), lambda i, k: (i, 0)),    # x_target
            pl.BlockSpec((d_in, H), lambda i, k: (0, 0)),     # Wr
            pl.BlockSpec((1, H), lambda i, k: (0, 0)),        # bias
        ],
        out_specs=pl.BlockSpec((tb, H), lambda i, k: (i, 0)),
        scratch_shapes=[pltpu.VMEM((tb, H), jnp.float32)],
        compiler_params=pltpu.CompilerParams(
            dimension_semantics=("parallel", "arbitrary"),
            vmem_limit_bytes=32 * 1024 * 1024),               # explicit budget (v7x-safe)
    )(Gp, Xp, Wcat, xtp, Wr, b)
    return out[:n_dst]


def _cma_kernel(emb_ref, w1_ref, b1_ref, w2_ref, o_ref):
    """Cross-modality attention over K modality embeddings, one batch block.

    One (K*tb, H) @ (H, H) matmul + one tanh; softmax over K with an EUP
    approximate reciprocal instead of K divides.
    """
    K, tb, H = emb_ref.shape
    emb = emb_ref[...]                                  # [K, tb, H]
    flat = emb.reshape(K * tb, H)                       # layout-compatible collapse
    h = jnp.tanh(jnp.dot(flat, w1_ref[...], preferred_element_type=jnp.float32)
                 + b1_ref[...])
    sc = jnp.sum(h * w2_ref[...], axis=-1, keepdims=True)     # [K*tb, 1]
    scores = [sc[i * tb:(i + 1) * tb] for i in range(K)]      # each [tb, 1]
    m = functools.reduce(jnp.maximum, scores)
    exps = [jnp.exp(s - m) for s in scores]
    denom = functools.reduce(lambda a, b_: a + b_, exps)
    inv = pl.reciprocal(denom, approx=True)
    out = jnp.zeros((tb, H), jnp.float32)
    for i in range(K):
        out = out + (exps[i] * inv) * emb[i]
    o_ref[...] = out.astype(o_ref.dtype)


def cross_modality_attention(emb_kbh, W1, b1, w2, *, tb_max=256):
    K, B, H = emb_kbh.shape
    tb = min(tb_max, _round_up(B, 8))
    Bp = _round_up(B, tb)
    emb_p = jnp.pad(emb_kbh, ((0, 0), (0, Bp - B), (0, 0)))
    out = pl.pallas_call(
        _cma_kernel,
        out_shape=jax.ShapeDtypeStruct((Bp, H), jnp.float32),
        grid=(Bp // tb,),
        in_specs=[
            pl.BlockSpec((K, tb, H), lambda i: (0, i, 0)),
            pl.BlockSpec((H, H), lambda i: (0, 0)),
            pl.BlockSpec((1, H), lambda i: (0, 0)),
            pl.BlockSpec((1, H), lambda i: (0, 0)),
        ],
        out_specs=pl.BlockSpec((tb, H), lambda i: (i, 0)),
        compiler_params=pltpu.CompilerParams(
            dimension_semantics=("parallel",),
            vmem_limit_bytes=32 * 1024 * 1024),
    )(emb_p, W1, b1, w2)
    return out[:B]


# ----------------------------------------------------------------------------
# Plain-JAX glue
# ----------------------------------------------------------------------------
def build_agg_mats(edge_index, n_src, n_dst):
    """Densify scatter-mean over edges into matmul operands (glue, not hot path)."""
    src, dst = edge_index[0], edge_index[1]
    dst_oh = jax.nn.one_hot(dst, n_dst, dtype=jnp.float32)       # [E, n_dst]
    deg = dst_oh.sum(axis=0)                                     # [n_dst]
    inv_deg = jnp.where(deg > 0, 1.0 / deg, 0.0)
    M = dst_oh.T * inv_deg[:, None]                              # [n_dst, E]
    src_oh = jax.nn.one_hot(src, n_src, dtype=jnp.float32)       # [E, n_src]
    A = M @ src_oh                                               # [n_dst, n_src]
    return A, M


def _split_modalities(x, input_dim_list):
    out, start = [], 0
    for d in input_dim_list:
        out.append(x[:, start:start + d])
        start += d
    return out


def _grafrank_forward(params, x, adjs, edge_attrs, input_dim_list, num_layers,
                      conv_fn, cma_fn):
    x_list = _split_modalities(x, input_dim_list)
    result = []
    for k in range(len(input_dim_list)):
        emb_k = None
        for i, ((edge_index, size), edge_attr) in enumerate(zip(adjs, edge_attrs)):
            n_src, n_dst = size
            x_k = x_list[k]
            x_src = x_k[:n_src]
            x_tgt = x_k[:n_dst]          # x_target = x[:size[1]] per modality
            A, M = build_agg_mats(edge_index, n_src, n_dst)
            p = params["modality_convs"][k][i]
            emb_k = conv_fn(A, x_src, M, edge_attr, x_tgt,
                            p["Wx"], p["We"], p["Wr"], p["b"],
                            apply_relu=(i != num_layers - 1))
            # dropout(p=0.5, training=False) == identity.
        result.append(emb_k)
    emb = jnp.stack(result, axis=0)              # [K, B, H]
    att = params["att"]
    return cma_fn(emb, att["W1"], att["b1"], att["w2"])


def grafrank_forward(params, x, adjs, edge_attrs, input_dim_list, num_layers):
    return _grafrank_forward(params, x, adjs, edge_attrs, input_dim_list,
                             num_layers, grafrank_conv, cross_modality_attention)


# Pure-JAX reference (same math, f32, no Pallas) for the correctness check.
def _conv_ref(A, x_src, M, e_attr, x_tgt, Wx, We, Wr, b, *, apply_relu=False):
    out = (A @ x_src) @ Wx + (M @ e_attr) @ We + x_tgt @ Wr + b
    return jnp.maximum(out, 0.0) if apply_relu else out


def _cma_ref(emb, W1, b1, w2):
    h = jnp.tanh(jnp.einsum("kbh,hd->kbd", emb, W1) + b1)
    s = jnp.sum(h * w2, axis=-1, keepdims=True)          # [K, B, 1]
    a = jax.nn.softmax(s, axis=0)
    return jnp.sum(a * emb, axis=0)


def grafrank_forward_ref(params, x, adjs, edge_attrs, input_dim_list, num_layers):
    return _grafrank_forward(params, x, adjs, edge_attrs, input_dim_list,
                             num_layers, _conv_ref, _cma_ref)


# ----------------------------------------------------------------------------
# Deterministic parameter init (matches the module's shape contract)
# ----------------------------------------------------------------------------
def init_params(key, input_dim_list, hidden_channels, edge_channels, num_layers):
    n_keys = len(input_dim_list) * num_layers * 4 + 3
    kiter = iter(jax.random.split(key, n_keys))
    params = {"modality_convs": []}
    for inp_dim in input_dim_list:
        layers = []
        for _ in range(num_layers):
            s_l = 1.0 / jnp.sqrt(jnp.float32(inp_dim + edge_channels))
            s_r = 1.0 / jnp.sqrt(jnp.float32(inp_dim))
            layers.append({
                "Wx": jax.random.normal(next(kiter), (inp_dim, hidden_channels), jnp.float32) * s_l,
                "We": jax.random.normal(next(kiter), (edge_channels, hidden_channels), jnp.float32) * s_l,
                "Wr": jax.random.normal(next(kiter), (inp_dim, hidden_channels), jnp.float32) * s_r,
                "b":  jax.random.normal(next(kiter), (1, hidden_channels), jnp.float32) * 0.01,
            })
        params["modality_convs"].append(layers)
    params["att"] = {
        "W1": jax.random.normal(next(kiter), (hidden_channels, hidden_channels), jnp.float32)
              / jnp.sqrt(jnp.float32(hidden_channels)),
        "b1": jax.random.normal(next(kiter), (1, hidden_channels), jnp.float32) * 0.01,
        "w2": jax.random.normal(next(kiter), (1, hidden_channels), jnp.float32)
              / jnp.sqrt(jnp.float32(hidden_channels)),
    }
    return params


# ----------------------------------------------------------------------------
if __name__ == "__main__":
    # Module hyperparameters (H=128 keeps output stores lane-dense).
    input_dim_list = [16, 16]               # two modalities
    in_channels = sum(input_dim_list)       # 32
    hidden_channels = 128
    edge_channels = 8
    num_layers = 2

    key = jax.random.PRNGKey(0)
    kx, ke0, ke1, ks0, kd0, ks1, kd1 = jax.random.split(key, 7)

    # Mini-batch: 16 sampled nodes, 8 target nodes.
    n_nodes = 16
    x = jax.random.normal(kx, (n_nodes, in_channels), jnp.float32)

    E0, E1 = 32, 16
    sizes = [(16, 8), (8, 8)]               # (num_src, num_dst) per sampled layer
    ei0 = jnp.stack([jax.random.randint(ks0, (E0,), 0, sizes[0][0]),
                     jax.random.randint(kd0, (E0,), 0, sizes[0][1])])
    ei1 = jnp.stack([jax.random.randint(ks1, (E1,), 0, sizes[1][0]),
                     jax.random.randint(kd1, (E1,), 0, sizes[1][1])])
    adjs = [(ei0, sizes[0]), (ei1, sizes[1])]
    edge_attrs = [jax.random.normal(ke0, (E0, edge_channels), jnp.float32),
                  jax.random.normal(ke1, (E1, edge_channels), jnp.float32)]

    params = init_params(jax.random.PRNGKey(42), input_dim_list,
                         hidden_channels, edge_channels, num_layers)

    out = grafrank_forward(params, x, adjs, edge_attrs, input_dim_list, num_layers)
    out = jax.block_until_ready(out)

    ref = grafrank_forward_ref(params, x, adjs, edge_attrs, input_dim_list, num_layers)
    assert out.shape == (sizes[-1][1], hidden_channels), out.shape
    # G and the projected neighbor features are streamed in bf16 (f32 MXU
    # accumulation), so compare at bf16-level tolerance.
    assert bool(jnp.allclose(out, ref, atol=2e-2, rtol=2e-2)), \
        "Pallas output mismatch vs pure-JAX reference"

    print("KERNEL_OK")
</pallas_src>

<mosaic_0001>
module attributes {stable_mosaic.version = 11 : i64} {
  func.func @_conv_kernel(%arg0: i32, %arg1: i32, %arg2: memref<8x128xbf16, #tpu.memory_space<vmem>>, %arg3: memref<128x24xf32, #tpu.memory_space<vmem>>, %arg4: memref<24x128xf32, #tpu.memory_space<vmem>>, %arg5: memref<8x16xf32, #tpu.memory_space<vmem>>, %arg6: memref<16x128xf32, #tpu.memory_space<vmem>>, %arg7: memref<1x128xf32, #tpu.memory_space<vmem>>, %arg8: memref<8x128xf32, #tpu.memory_space<vmem>>, %arg9: memref<8x128xf32, #tpu.memory_space<vmem>>) attributes {dimension_semantics = [#tpu.dimension_semantics<parallel>, #tpu.dimension_semantics<arbitrary>], iteration_bounds = array<i64: 1, 1>, scalar_prefetch = 0 : i64, scratch_operands = 1 : i64, tpu.core_type = #tpu.core_type<tc>, window_params = [{transform_indices = @transform_0, window_bounds = array<i64: 8, 128>}, {transform_indices = @transform_1, window_bounds = array<i64: 128, 24>}, {pipeline_mode = #tpu.pipeline_mode<synchronous>, transform_indices = @transform_2, window_bounds = array<i64: 24, 128>}, {transform_indices = @transform_3, window_bounds = array<i64: 8, 16>}, {pipeline_mode = #tpu.pipeline_mode<synchronous>, transform_indices = @transform_4, window_bounds = array<i64: 16, 128>}, {pipeline_mode = #tpu.pipeline_mode<synchronous>, transform_indices = @transform_5, window_bounds = array<i64: 1, 128>}, {transform_indices = @transform_6, window_bounds = array<i64: 8, 128>}]} {
    %c0_i32 = arith.constant 0 : i32
    %0 = arith.cmpi eq, %arg1, %c0_i32 : i32
    %1 = arith.extui %0 : i1 to i32
    %c0_i32_0 = arith.constant 0 : i32
    %2 = arith.cmpi ne, %1, %c0_i32_0 : i32
    scf.if %2 {
      %c0_13 = arith.constant 0 : index
      %c0_14 = arith.constant 0 : index
      %15 = vector.load %arg5[%c0_13, %c0_14] : memref<8x16xf32, #tpu.memory_space<vmem>>, vector<8x16xf32>
      %c0_15 = arith.constant 0 : index
      %c0_16 = arith.constant 0 : index
      %16 = vector.load %arg6[%c0_15, %c0_16] : memref<16x128xf32, #tpu.memory_space<vmem>>, vector<16x128xf32>
      %cst_17 = arith.constant dense<0.000000e+00> : vector<8x128xf32>
      %17 = tpu.matmul %15, %16, %cst_17 {dimension_numbers = #tpu.dot_dimension_numbers<[1], [0], [0], [1], [0, 0, 1, 1], [], []>} : vector<8x16xf32>, vector<16x128xf32>, vector<8x128xf32> -> vector<8x128xf32>
      %c0_18 = arith.constant 0 : index
      %c0_19 = arith.constant 0 : index
      %18 = vector.load %arg7[%c0_18, %c0_19] : memref<1x128xf32, #tpu.memory_space<vmem>>, vector<1x128xf32>
      %19 = vector.broadcast %18 : vector<1x128xf32> to vector<8x128xf32>
      %20 = arith.addf %17, %19 : vector<8x128xf32>
      %c0_20 = arith.constant 0 : index
      %c0_21 = arith.constant 0 : index
      %21 = vector.load %arg9[%c0_20, %c0_21] : memref<8x128xf32, #tpu.memory_space<vmem>>, vector<8x128xf32>
      tpu.vector_store %arg9[%c0_20, %c0_21], %20 {strides = array<i32>} : memref<8x128xf32, #tpu.memory_space<vmem>>, vector<8x128xf32>,
    } else {
    }
    %c0 = arith.constant 0 : index
    %c0_1 = arith.constant 0 : index
    %3 = vector.load %arg3[%c0, %c0_1] : memref<128x24xf32, #tpu.memory_space<vmem>>, vector<128x24xf32>
    %c0_2 = arith.constant 0 : index
    %c0_3 = arith.constant 0 : index
    %4 = vector.load %arg4[%c0_2, %c0_3] : memref<24x128xf32, #tpu.memory_space<vmem>>, vector<24x128xf32>
    %cst = arith.constant dense<0.000000e+00> : vector<128x128xf32>
    %5 = tpu.matmul %3, %4, %cst {dimension_numbers = #tpu.dot_dimension_numbers<[1], [0], [0], [1], [0, 0, 1, 1], [], []>} : vector<128x24xf32>, vector<24x128xf32>, vector<128x128xf32> -> vector<128x128xf32>
    %c0_4 = arith.constant 0 : index
    %c0_5 = arith.constant 0 : index
    %6 = vector.load %arg9[%c0_4, %c0_5] : memref<8x128xf32, #tpu.memory_space<vmem>>, vector<8x128xf32>
    %c0_6 = arith.constant 0 : index
    %c0_7 = arith.constant 0 : index
    %7 = vector.load %arg2[%c0_6, %c0_7] : memref<8x128xbf16, #tpu.memory_space<vmem>>, vector<8x128xbf16>
    %8 = arith.truncf %5 : vector<128x128xf32> to vector<128x128xbf16>
    %cst_8 = arith.constant dense<0.000000e+00> : vector<8x128xf32>
    %9 = tpu.matmul %7, %8, %cst_8 {dimension_numbers = #tpu.dot_dimension_numbers<[1], [0], [0], [1], [0, 0, 1, 1], [], []>} : vector<8x128xbf16>, vector<128x128xbf16>, vector<8x128xf32> -> vector<8x128xf32>
    %10 = arith.addf %6, %9 : vector<8x128xf32>
    %c0_9 = arith.constant 0 : index
    %c0_10 = arith.constant 0 : index
    %11 = vector.load %arg9[%c0_9, %c0_10] : memref<8x128xf32, #tpu.memory_space<vmem>>, vector<8x128xf32>
    tpu.vector_store %arg9[%c0_9, %c0_10], %10 {strides = array<i32>} : memref<8x128xf32, #tpu.memory_space<vmem>>, vector<8x128xf32>,
    %c0_i32_11 = arith.constant 0 : i32
    %12 = arith.cmpi eq, %arg1, %c0_i32_11 : i32
    %13 = arith.extui %12 : i1 to i32
    %c0_i32_12 = arith.constant 0 : i32
    %14 = arith.cmpi ne, %13, %c0_i32_12 : i32
    scf.if %14 {
      %c0_13 = arith.constant 0 : index
      %c0_14 = arith.constant 0 : index
      %15 = vector.load %arg9[%c0_13, %c0_14] : memref<8x128xf32, #tpu.memory_space<vmem>>, vector<8x128xf32>
      %cst_15 = arith.constant 0.000000e+00 : f32
      %16 = vector.broadcast %cst_15 : f32 to vector<8x128xf32>
      %17 = arith.maximumf %15, %16 : vector<8x128xf32>
      %c0_16 = arith.constant 0 : index
      %c0_17 = arith.constant 0 : index
      %18 = vector.load %arg8[%c0_16, %c0_17] : memref<8x128xf32, #tpu.memory_space<vmem>>, vector<8x128xf32>
      tpu.vector_store %arg8[%c0_16, %c0_17], %17 {strides = array<i32>} : memref<8x128xf32, #tpu.memory_space<vmem>>, vector<8x128xf32>,
    } else {
    }
    return
  }
  func.func @transform_0(%arg0: i32, %arg1: i32) -> (i32, i32) {
    %c0_i32 = arith.constant 0 : i32
    return %arg0, %arg1 : i32, i32
  }
  func.func @transform_1(%arg0: i32, %arg1: i32) -> (i32, i32) {
    %c0_i32 = arith.constant 0 : i32
    %c0_i32_0 = arith.constant 0 : i32
    return %arg1, %c0_i32 : i32, i32
  }
  func.func @transform_2(%arg0: i32, %arg1: i32) -> (i32, i32) {
    %c0_i32 = arith.constant 0 : i32
    %c0_i32_0 = arith.constant 0 : i32
    %c0_i32_1 = arith.constant 0 : i32
    return %c0_i32, %c0_i32_0 : i32, i32
  }
  func.func @transform_3(%arg0: i32, %arg1: i32) -> (i32, i32) {
    %c0_i32 = arith.constant 0 : i32
    %c0_i32_0 = arith.constant 0 : i32
    return %arg0, %c0_i32 : i32, i32
  }
  func.func @transform_4(%arg0: i32, %arg1: i32) -> (i32, i32) {
    %c0_i32 = arith.constant 0 : i32
    %c0_i32_0 = arith.constant 0 : i32
    %c0_i32_1 = arith.constant 0 : i32
    return %c0_i32, %c0_i32_0 : i32, i32
  }
  func.func @transform_5(%arg0: i32, %arg1: i32) -> (i32, i32) {
    %c0_i32 = arith.constant 0 : i32
    %c0_i32_0 = arith.constant 0 : i32
    %c0_i32_1 = arith.constant 0 : i32
    return %c0_i32, %c0_i32_0 : i32, i32
  }
  func.func @transform_6(%arg0: i32, %arg1: i32) -> (i32, i32) {
    %c0_i32 = arith.constant 0 : i32
    %c0_i32_0 = arith.constant 0 : i32
    return %arg0, %c0_i32 : i32, i32
  }
}

</mosaic_0001>

<llo_original>
// kernel: tpu_custom_call.1
$region0: #{tpu_custom_call.1}
  #allocation0 [shape = 'u32[]', space=smem, size = 0x4, offset = 0x4, fixed_abs, tag = 'smem constant byte address 0x4 - core index']
  #allocation1 [shape = 'u32[144,128]{1,0:T(1,128)}', space=vmem, size = 0x12000, scoped, tag = 'internal scratch']
  #allocation2 [shape = 'f32[8,128]{1,0:T(8,128)}', space=vmem, size = 0x1000, scoped, tag = 'scratch operand']
  %s0 = inlined_call_operand.vmem [shape: bf16[8,128], index: 0, kind: input, shape index: {}]
  %s1 = inlined_call_operand.vmem [shape: f32[128,24], index: 1, kind: input, shape index: {}]
  %s2 = inlined_call_operand.vmem [shape: f32[24,128], index: 2, kind: input, shape index: {}]
  %s3 = inlined_call_operand.vmem [shape: f32[8,16], index: 3, kind: input, shape index: {}]
  %s4 = inlined_call_operand.vmem [shape: f32[16,128], index: 4, kind: input, shape index: {}]
  %s5 = inlined_call_operand.vmem [shape: f32[1,128], index: 5, kind: input, shape index: {}]
  %s6 = inlined_call_operand.hbm [shape: f32[8,128], index: 6, kind: output, shape index: {}]
  %s7 = sld [smem:[#allocation0]]
  $region42: #{tpu_custom_call.1} parent=0
    _
  %s9 = ssub.s32 1, %s7
  %s10 = scalar_select 0, %s9, %s7
  $region1: #{tpu_custom_call.1} parent=0
    #allocation3 [shape = 'u8[4096]{0}', space=vmem, size = 0x1000, scoped, tag = 'output window, operand 0, single buffered']
    #allocation4 [shape = 's32[1]{0}', space=sflag, size = 0x4, scoped, tag = 'scoped memory for tpu_custom_call.1']
    %11 = vsyncpa [#allocation4], 0
    // Predicated region
    $region2: #{tpu_custom_call.1} parent=1 // pred_check
      _
    $region3: #{tpu_custom_call.1} parent=1 // pred_check_branch
      %13 = sbr.rel (0) target = $region5
    $region4: #{tpu_custom_call.1} parent=1 // pred_region
      _
    $region5: #{tpu_custom_call.1} parent=1 // pred_fallthru
      _
    // Predicated region
    $region6: #{tpu_custom_call.1} parent=1 // pred_check
      _
    $region7: #{tpu_custom_call.1} parent=1 // pred_check_branch
      %15 = sbr.rel (0) target = $region9
    $region8: #{tpu_custom_call.1} parent=1 // pred_region
      _
    $region9: #{tpu_custom_call.1} parent=1 // pred_fallthru
      _
    // Predicated region
    $region10: #{tpu_custom_call.1} parent=1 // pred_check
      _
    $region11: #{tpu_custom_call.1} parent=1 // pred_check_branch
      %17 = sbr.rel (0) target = $region13
    $region12: #{tpu_custom_call.1} parent=1 // pred_region
      _
    $region13: #{tpu_custom_call.1} parent=1 // pred_fallthru
      _
    // Predicated region
    $region14: #{tpu_custom_call.1} parent=1 // pred_check
      _
    $region15: #{tpu_custom_call.1} parent=1 // pred_check_branch
      %19 = sbr.rel (0) target = $region17
    $region16: #{tpu_custom_call.1} parent=1 // pred_region
      _
    $region17: #{tpu_custom_call.1} parent=1 // pred_fallthru
      _
    // Predicated region
    $region18: #{tpu_custom_call.1} parent=1 // pred_check
      _
    $region19: #{tpu_custom_call.1} parent=1 // pred_check_branch
      %21 = sbr.rel (0) target = $region21
    $region20: #{tpu_custom_call.1} parent=1 // pred_region
      _
    $region21: #{tpu_custom_call.1} parent=1 // pred_fallthru
      _
    // Predicated region
    $region22: #{tpu_custom_call.1} parent=1 // pred_check
      _
    $region23: #{tpu_custom_call.1} parent=1 // pred_check_branch
      %23 = sbr.rel (0) target = $region25
    $region24: #{tpu_custom_call.1} parent=1 // pred_region
      _
    $region25: #{tpu_custom_call.1} parent=1 // pred_fallthru
      _
    %p25 = scmp.eq.s32.totalorder 0, 0
    // Predicated region
    $region26: #{tpu_custom_call.1} parent=1 // pred_check
      %p26 = pneg %p25
    $region27: #{tpu_custom_call.1} parent=1 // pred_check_branch
      %28 = sbr.rel (%p26) target = $region29
    $region28: #{tpu_custom_call.1} parent=1 // pred_region
      %v29 = vld [vmem:[%s3] sm:$0xff]
      %v30 = vld [vmem:[%s4] sm:$0xff]
      %v31 = vld [vmem:[%s4 + $0x8] sm:$0xff]
      %v32 = vld [vmem:[%s5] sm:$0x1]
      %v34 = vlaneseq
      %v35 = vshrl.u32 %v34, 7
      %v36 = vsub.s32 0, %v35
      %v37 = vrot.slane %v32, %v36
      %vm39 = vcmask 130048
      %v41 = vsel %vm39, %v29, 0
      %43 = vmatprep.subr.mxu0 0.0
      %44 = vmatpush1.msra.mxu0 %v30
      %45 = vmatprep.subr.mxu0 0.0
      %46 = vmatpush1.msra.mxu0 %v31
      %47 = vmatprep.subr.mxu0 0.0
      %48 = vmatpush1.msra.mxu0 0.0
      %49 = vmatprep.subr.mxu0 0.0
      %50 = vmatpush1.msra.mxu0 0.0
      %51 = vmatprep.subr.mxu0 0.0
      %52 = vmatpush1.msra.mxu0 0.0
      %53 = vmatprep.subr.mxu0 0.0
      %54 = vmatpush1.msra.mxu0 0.0
      %55 = vmatprep.subr.mxu0 0.0
      %56 = vmatpush1.msra.mxu0 0.0
      %57 = vmatprep.subr.mxu0 0.0
      %58 = vmatpush1.msra.mxu0 0.0
      %59 = vmatprep.subr.mxu0 0.0
      %60 = vmatpush1.msra.mxu0 0.0
      %61 = vmatprep.subr.mxu0 0.0
      %62 = vmatpush1.msra.mxu0 0.0
      %63 = vmatprep.subr.mxu0 0.0
      %64 = vmatpush1.msra.mxu0 0.0
      %65 = vmatprep.subr.mxu0 0.0
      %66 = vmatpush1.msra.mxu0 0.0
      %67 = vmatprep.subr.mxu0 0.0
      %68 = vmatpush1.msra.mxu0 0.0
      %69 = vmatprep.subr.mxu0 0.0
      %70 = vmatpush1.msra.mxu0 0.0
      %71 = vmatprep.subr.mxu0 0.0
      %72 = vmatpush1.msra.mxu0 0.0
      %73 = vmatprep.subr.mxu0 0.0
      %74 = vmatpush1.msra.mxu0 0.0
      %75 = vmatprep.subr.mxu0 0.0
      %76 = vmatpush1.msra.mxu0 0.0
      %77 = vmatprep.subr.mxu0 0.0
      %78 = vmatpush1.msra.mxu0 0.0
      %79 = vmatprep.subr.mxu0 0.0
      %80 = vmatpush1.msra.mxu0 0.0
      %81 = vmatprep.subr.mxu0 0.0
      %82 = vmatpush1.msra.mxu0 0.0
      %83 = vmatprep.subr.mxu0 0.0
      %84 = vmatpush1.msra.mxu0 0.0
      %85 = vmatprep.subr.mxu0 0.0
      %86 = vmatpush1.msra.mxu0 0.0
      %87 = vmatprep.subr.mxu0 0.0
      %88 = vmatpush1.msra.mxu0 0.0
      %89 = vmatprep.subr.mxu0 0.0
      %90 = vmatpush1.msra.mxu0 0.0
      %91 = vmatprep.subr.mxu0 0.0
      %92 = vmatpush1.msra.mxu0 0.0
      %93 = vmatprep.subr.mxu0 0.0
      %94 = vmatpush1.msra.mxu0 0.0
      %95 = vmatprep.subr.mxu0 0.0
      %96 = vmatpush1.msra.mxu0 0.0
      %97 = vmatprep.subr.mxu0 0.0
      %98 = vmatpush1.msra.mxu0 0.0
      %99 = vmatprep.subr.mxu0 0.0
      %100 = vmatpush1.msra.mxu0 0.0
      %101 = vmatprep.subr.mxu0 0.0
      %102 = vmatpush1.msra.mxu0 0.0
      %103 = vmatprep.subr.mxu0 0.0
      %104 = vmatpush1.msra.mxu0 0.0
      %105 = vmatprep.subr.mxu0 0.0
      %106 = vmatpush1.msra.mxu0 0.0
      %107 = vmatprep.mubr.f32.mxu0 0.0
      %108 = vmatmul.mubr.f32.gmra.mrb[0].mxu0 %v41
      %v109 = vpop.f32.mrb[0].mxu0
      %v110 = vadd.f32 %v37, %v109
      %v111 = vpop.f32.mrb[0].mxu0
      %112 = vdwg.mxu0
      %113 = vst [vmem:[#allocation2] sm:$0xff] %v110
    $region29: #{tpu_custom_call.1} parent=1 // pred_fallthru
      _
    %v114 = vld [vmem:[%s1] sm:$0xff]
    %v115 = vld [vmem:[%s1 + $0x8] sm:$0xff]
    %v116 = vld [vmem:[%s1 + $0x10] sm:$0xff]
    %v117 = vld [vmem:[%s1 + $0x18] sm:$0xff]
    %v118 = vld [vmem:[%s1 + $0x20] sm:$0xff]
    %v119 = vld [vmem:[%s1 + $0x28] sm:$0xff]
    %v120 = vld [vmem:[%s1 + $0x30] sm:$0xff]
    %v121 = vld [vmem:[%s1 + $0x38] sm:$0xff]
    %v122 = vld [vmem:[%s1 + $0x40] sm:$0xff]
    %v123 = vld [vmem:[%s1 + $0x48] sm:$0xff]
    %v124 = vld [vmem:[%s1 + $0x50] sm:$0xff]
    %v125 = vld [vmem:[%s1 + $0x58] sm:$0xff]
    %v126 = vld [vmem:[%s1 + $0x60] sm:$0xff]
    %v127 = vld [vmem:[%s1 + $0x68] sm:$0xff]
    %v128 = vld [vmem:[%s1 + $0x70] sm:$0xff]
    %v129 = vld [vmem:[%s1 + $0x78] sm:$0xff]
    %v130 = vld [vmem:[%s2] sm:$0xff]
    %v131 = vld [vmem:[%s2 + $0x8] sm:$0xff]
    %v132 = vld [vmem:[%s2 + $0x10] sm:$0xff]
    %vm133 = vcmask 195584
    %v135 = vsel %vm133, %v114, 0
    %v138 = vsel %vm133, %v115, 0
    %v141 = vsel %vm133, %v116, 0
    %v144 = vsel %vm133, %v117, 0
    %v147 = vsel %vm133, %v118, 0
    %v150 = vsel %vm133, %v119, 0
    %v153 = vsel %vm133, %v120, 0
    %v156 = vsel %vm133, %v121, 0
    %v159 = vsel %vm133, %v122, 0
    %v162 = vsel %vm133, %v123, 0
    %v165 = vsel %vm133, %v124, 0
    %v168 = vsel %vm133, %v125, 0
    %v171 = vsel %vm133, %v126, 0
    %v174 = vsel %vm133, %v127, 0
    %v177 = vsel %vm133, %v128, 0
    %v180 = vsel %vm133, %v129, 0
    %182 = vmatprep.subr.mxu0 0.0
    %183 = vmatpush1.msra.mxu0 %v130
    %184 = vmatprep.subr.mxu0 0.0
    %185 = vmatpush1.msra.mxu0 %v131
    %186 = vmatprep.subr.mxu0 0.0
    %187 = vmatpush1.msra.mxu0 %v132
    %188 = vmatprep.subr.mxu0 0.0
    %189 = vmatpush1.msra.mxu0 0.0
    %190 = vmatprep.subr.mxu0 0.0
    %191 = vmatpush1.msra.mxu0 0.0
    %192 = vmatprep.subr.mxu0 0.0
    %193 = vmatpush1.msra.mxu0 0.0
    %194 = vmatprep.subr.mxu0 0.0
    %195 = vmatpush1.msra.mxu0 0.0
    %196 = vmatprep.subr.mxu0 0.0
    %197 = vmatpush1.msra.mxu0 0.0
    %198 = vmatprep.subr.mxu0 0.0
    %199 = vmatpush1.msra.mxu0 0.0
    %200 = vmatprep.subr.mxu0 0.0
    %201 = vmatpush1.msra.mxu0 0.0
    %202 = vmatprep.subr.mxu0 0.0
    %203 = vmatpush1.msra.mxu0 0.0
    %204 = vmatprep.subr.mxu0 0.0
    %205 = vmatpush1.msra.mxu0 0.0
    %206 = vmatprep.subr.mxu0 0.0
    %207 = vmatpush1.msra.mxu0 0.0
    %208 = vmatprep.subr.mxu0 0.0
    %209 = vmatpush1.msra.mxu0 0.0
    %210 = vmatprep.subr.mxu0 0.0
    %211 = vmatpush1.msra.mxu0 0.0
    %212 = vmatprep.subr.mxu0 0.0
    %213 = vmatpush1.msra.mxu0 0.0
    %214 = vmatprep.subr.mxu0 0.0
    %215 = vmatpush1.msra.mxu0 0.0
    %216 = vmatprep.subr.mxu0 0.0
    %217 = vmatpush1.msra.mxu0 0.0
    %218 = vmatprep.subr.mxu0 0.0
    %219 = vmatpush1.msra.mxu0 0.0
    %220 = vmatprep.subr.mxu0 0.0
    %221 = vmatpush1.msra.mxu0 0.0
    %222 = vmatprep.subr.mxu0 0.0
    %223 = vmatpush1.msra.mxu0 0.0
    %224 = vmatprep.subr.mxu0 0.0
    %225 = vmatpush1.msra.mxu0 0.0
    %226 = vmatprep.subr.mxu0 0.0
    %227 = vmatpush1.msra.mxu0 0.0
    %228 = vmatprep.subr.mxu0 0.0
    %229 = vmatpush1.msra.mxu0 0.0
    %230 = vmatprep.subr.mxu0 0.0
    %231 = vmatpush1.msra.mxu0 0.0
    %232 = vmatprep.subr.mxu0 0.0
    %233 = vmatpush1.msra.mxu0 0.0
    %234 = vmatprep.subr.mxu0 0.0
    %235 = vmatpush1.msra.mxu0 0.0
    %236 = vmatprep.subr.mxu0 0.0
    %237 = vmatpush1.msra.mxu0 0.0
    %238 = vmatprep.subr.mxu0 0.0
    %239 = vmatpush1.msra.mxu0 0.0
    %240 = vmatprep.subr.mxu0 0.0
    %241 = vmatpush1.msra.mxu0 0.0
    %242 = vmatprep.subr.mxu0 0.0
    %243 = vmatpush1.msra.mxu0 0.0
    %244 = vmatprep.subr.mxu0 0.0
    %245 = vmatpush1.msra.mxu0 0.0
    %246 = vmatprep.mubr.f32.mxu0 0.0
    %247 = vmatmul.mubr.f32.gmra.mrb[0].mxu0 %v135
    %v248 = vpop.f32.mrb[0].mxu0
    %v249 = vadd.f32 0.0, %v248
    %v250 = vpop.f32.mrb[0].mxu0
    %251 = vmatprep.mubr.f32.mxu0 0.0
    %252 = vmatmul.mubr.f32.gmra.mrb[0].mxu0 %v138
    %v253 = vpop.f32.mrb[0].mxu0
    %v254 = vadd.f32 0.0, %v253
    %v255 = vpop.f32.mrb[0].mxu0
    %256 = vmatprep.mubr.f32.mxu0 0.0
    %257 = vmatmul.mubr.f32.gmra.mrb[0].mxu0 %v141
    %v258 = vpop.f32.mrb[0].mxu0
    %v259 = vadd.f32 0.0, %v258
    %v260 = vpop.f32.mrb[0].mxu0
    %261 = vmatprep.mubr.f32.mxu0 0.0
    %262 = vmatmul.mubr.f32.gmra.mrb[0].mxu0 %v144
    %v263 = vpop.f32.mrb[0].mxu0
    %v264 = vadd.f32 0.0, %v263
    %v265 = vpop.f32.mrb[0].mxu0
    %266 = vmatprep.mubr.f32.mxu0 0.0
    %267 = vmatmul.mubr.f32.gmra.mrb[0].mxu0 %v147
    %v268 = vpop.f32.mrb[0].mxu0
    %v269 = vadd.f32 0.0, %v268
    %v270 = vpop.f32.mrb[0].mxu0
    %271 = vmatprep.mubr.f32.mxu0 0.0
    %272 = vmatmul.mubr.f32.gmra.mrb[0].mxu0 %v150
    %v273 = vpop.f32.mrb[0].mxu0
    %v274 = vadd.f32 0.0, %v273
    %v275 = vpop.f32.mrb[0].mxu0
    %276 = vmatprep.mubr.f32.mxu0 0.0
    %277 = vmatmul.mubr.f32.gmra.mrb[0].mxu0 %v153
    %v278 = vpop.f32.mrb[0].mxu0
    %v279 = vadd.f32 0.0, %v278
    %v280 = vpop.f32.mrb[0].mxu0
    %281 = vmatprep.mubr.f32.mxu0 0.0
    %282 = vmatmul.mubr.f32.gmra.mrb[0].mxu0 %v156
    %v283 = vpop.f32.mrb[0].mxu0
    %v284 = vadd.f32 0.0, %v283
    %v285 = vpop.f32.mrb[0].mxu0
    %286 = vmatprep.mubr.f32.mxu0 0.0
    %287 = vmatmul.mubr.f32.gmra.mrb[0].mxu0 %v159
    %v288 = vpop.f32.mrb[0].mxu0
    %v289 = vadd.f32 0.0, %v288
    %v290 = vpop.f32.mrb[0].mxu0
    %291 = vmatprep.mubr.f32.mxu0 0.0
    %292 = vmatmul.mubr.f32.gmra.mrb[0].mxu0 %v162
    %v293 = vpop.f32.mrb[0].mxu0
    %v294 = vadd.f32 0.0, %v293
    %v295 = vpop.f32.mrb[0].mxu0
    %296 = vmatprep.mubr.f32.mxu0 0.0
    %297 = vmatmul.mubr.f32.gmra.mrb[0].mxu0 %v165
    %v298 = vpop.f32.mrb[0].mxu0
    %v299 = vadd.f32 0.0, %v298
    %v300 = vpop.f32.mrb[0].mxu0
    %301 = vmatprep.mubr.f32.mxu0 0.0
    %302 = vmatmul.mubr.f32.gmra.mrb[0].mxu0 %v168
    %v303 = vpop.f32.mrb[0].mxu0
    %v304 = vadd.f32 0.0, %v303
    %v305 = vpop.f32.mrb[0].mxu0
    %306 = vmatprep.mubr.f32.mxu0 0.0
    %307 = vmatmul.mubr.f32.gmra.mrb[0].mxu0 %v171
    %v308 = vpop.f32.mrb[0].mxu0
    %v309 = vadd.f32 0.0, %v308
    %v310 = vpop.f32.mrb[0].mxu0
    %311 = vmatprep.mubr.f32.mxu0 0.0
    %312 = vmatmul.mubr.f32.gmra.mrb[0].mxu0 %v174
    %v313 = vpop.f32.mrb[0].mxu0
    %v314 = vadd.f32 0.0, %v313
    %v315 = vpop.f32.mrb[0].mxu0
    %316 = vmatprep.mubr.f32.mxu0 0.0
    %317 = vmatmul.mubr.f32.gmra.mrb[0].mxu0 %v177
    %v318 = vpop.f32.mrb[0].mxu0
    %v319 = vadd.f32 0.0, %v318
    %v320 = vpop.f32.mrb[0].mxu0
    %321 = vmatprep.mubr.f32.mxu0 0.0
    %322 = vmatmul.mubr.f32.gmra.mrb[0].mxu0 %v180
    %v323 = vpop.f32.mrb[0].mxu0
    %v324 = vadd.f32 0.0, %v323
    %v325 = vpop.f32.mrb[0].mxu0
    %326 = vdwg.mxu0
    %v327 = vld [vmem:[#allocation2] sm:$0xff]
    %v328 = vld [vmem:[%s0] sm:$0xf]
    %v329 = vpack.c.bf16 %v254, %v249
    %v330 = vpack.c.bf16 %v264, %v259
    %v331 = vpack.c.bf16 %v274, %v269
    %v332 = vpack.c.bf16 %v284, %v279
    %v333 = vpack.c.bf16 %v294, %v289
    %v334 = vpack.c.bf16 %v304, %v299
    %v335 = vpack.c.bf16 %v314, %v309
    %v336 = vpack.c.bf16 %v324, %v319
    %337 = vmatprep.subr.bf16.mxu0 0
    %338 = vmatpush1.bf16.msra.mxu0 %v329
    %339 = vmatprep.subr.bf16.mxu0 0
    %340 = vmatpush1.bf16.msra.mxu0 %v330
    %341 = vmatprep.subr.bf16.mxu0 0
    %342 = vmatpush1.bf16.msra.mxu0 %v331
    %343 = vmatprep.subr.bf16.mxu0 0
    %344 = vmatpush1.bf16.msra.mxu0 %v332
    %345 = vmatprep.subr.bf16.mxu0 0
    %346 = vmatpush1.bf16.msra.mxu0 %v333
    %347 = vmatprep.subr.bf16.mxu0 0
    %348 = vmatpush1.bf16.msra.mxu0 %v334
    %349 = vmatprep.subr.bf16.mxu0 0
    %350 = vmatpush1.bf16.msra.mxu0 %v335
    %351 = vmatprep.subr.bf16.mxu0 0
    %352 = vmatpush1.bf16.msra.mxu0 %v336
    %353 = vmatprep.subr.bf16.mxu0 0
    %354 = vmatpush1.bf16.msra.mxu0 0
    %355 = vmatprep.subr.bf16.mxu0 0
    %356 = vmatpush1.bf16.msra.mxu0 0
    %357 = vmatprep.subr.bf16.mxu0 0
    %358 = vmatpush1.bf16.msra.mxu0 0
    %359 = vmatprep.subr.bf16.mxu0 0
    %360 = vmatpush1.bf16.msra.mxu0 0
    %361 = vmatprep.subr.bf16.mxu0 0
    %362 = vmatpush1.bf16.msra.mxu0 0
    %363 = vmatprep.subr.bf16.mxu0 0
    %364 = vmatpush1.bf16.msra.mxu0 0
    %365 = vmatprep.subr.bf16.mxu0 0
    %366 = vmatpush1.bf16.msra.mxu0 0
    %367 = vmatprep.subr.bf16.mxu0 0
    %368 = vmatpush1.bf16.msra.mxu0 0
    %369 = vmatprep.mubr.bf16.mxu0 0
    %370 = vmatmul.mubr.bf16.gmra.mrb[0].mxu0 %v328
    %v371 = vpop.f32.mrb[0].mxu0
    %v372 = vadd.f32 0.0, %v371
    %v373 = vpop.f32.mrb[0].mxu0
    %v374 = vpop.f32.mrb[0].mxu0
    %v375 = vpop.f32.mrb[0].mxu0
    %376 = vdwg.mxu0
    %v377 = vadd.f32 %v327, %v372
    %378 = vst [vmem:[#allocation2] sm:$0xff] %v377
    // Predicated region
    $region30: #{tpu_custom_call.1} parent=1 // pred_check
      %p379 = pneg %p25
    $region31: #{tpu_custom_call.1} parent=1 // pred_check_branch
      %381 = sbr.rel (%p379) target = $region33
    $region32: #{tpu_custom_call.1} parent=1 // pred_region
      %v382 = vld [vmem:[#allocation2] sm:$0xff]
      %v383 = vmax.f32 %v382, 0.0
      %384 = vst [vmem:[#allocation3] sm:$0xff] %v383
    $region33: #{tpu_custom_call.1} parent=1 // pred_fallthru
      _
    // Predicated region
    $region34: #{tpu_custom_call.1} parent=1 // pred_check
      _
    $region35: #{tpu_custom_call.1} parent=1 // pred_check_branch
      %386 = sbr.rel (0) target = $region37
    $region36: #{tpu_custom_call.1} parent=1 // pred_region
      %s388 = ssub.s32 128, 128
      %389 = vsyncadd [#allocation4], %s388
      %s391 = sshll.u32 [#allocation3], 4
      %s392 = int_to_ptr.vmem [resolvable:$true] %s391
      %394 = dma.vmem_to_hbm [thread:$0]  %s392, 128, %s6, [#allocation4]
    $region37: #{tpu_custom_call.1} parent=1 // pred_fallthru
      _
    // Predicated region
    $region38: #{tpu_custom_call.1} parent=1 // pred_check
      _
    $region39: #{tpu_custom_call.1} parent=1 // pred_check_branch
      %396 = sbr.rel (0) target = $region41
    $region40: #{tpu_custom_call.1} parent=1 // pred_region
      %397 = dma.done [#allocation4], 128
    $region41: #{tpu_custom_call.1} parent=1 // pred_fallthru
      _
    %398 = vsyncpa [#allocation4], 1

</llo_original>
